<compile_context>
chip_gen: v7x
topology: tpu7x:2x2x1
jax: 0.10.0
libtpu: 0.0.40
codegen_flags: <defaults>
</compile_context>

<pallas_src>
import functools

import jax
import jax.numpy as jnp
from jax.experimental import pallas as pl
from jax.experimental.pallas import tpu as pltpu

HIDDEN = 50


def _pinn_kernel(x_ref, t_ref, w1x_ref, w1t_ref, b1_ref,
                 w2t_ref, b2_ref, w3_ref, b3_ref, o_ref):
    # x_ref, t_ref : (1, tn)            lane-dense batch tiles
    # w1x, w1t, b1 : (50, 1)            layer-1 weights as columns
    # w2t          : (50, 50)           layer-2 weight, pre-transposed
    # b2           : (50, 1)
    # w3           : (50, 1)            layer-3 weight as a column
    # b3           : (1, 1)
    # o_ref        : (1, tn)            lane-dense output tile
    x = x_ref[...]
    t = t_ref[...]

    # Layer 1 on the VPU: (50,1)*(1,tn) broadcasts -> (50, tn); skips a K=2 MXU pass.
    h1 = jnp.tanh(w1x_ref[...] * x + w1t_ref[...] * t + b1_ref[...])

    # Layer 2 on the MXU: (50,50) @ (50,tn) -> (50, tn).
    h2 = jnp.tanh(
        jnp.dot(w2t_ref[...], h1, preferred_element_type=jnp.float32) + b2_ref[...]
    )

    # Layer 3 on VPU + XLU: multiply + sublane reduce keeps the result lane-dense.
    out = jnp.sum(w3_ref[...] * h2, axis=0, keepdims=True) + b3_ref[...]
    o_ref[...] = out.astype(o_ref.dtype)


@functools.partial(jax.jit, static_argnames=("tn",))
def pinn_1d_burgers_forward(x, t, params, *, tn=2048):
    """x, t: (N, 1) float32. Returns (N, 1) float32."""
    assert tn % 128 == 0, "batch tile must be a multiple of 128 lanes"
    w1, b1, w2, b2, w3, b3 = params
    n = x.shape[0]

    # Lane-dense layout: batch on the lane axis, padded to a multiple of tile.
    n128 = ((n + 127) // 128) * 128
    tn_eff = min(tn, n128)                      # multiple of 128 by construction
    n_pad = ((n + tn_eff - 1) // tn_eff) * tn_eff
    grid = (n_pad // tn_eff,)

    x_row = jnp.pad(x.astype(jnp.float32).reshape(1, n), ((0, 0), (0, n_pad - n)))
    t_row = jnp.pad(t.astype(jnp.float32).reshape(1, n), ((0, 0), (0, n_pad - n)))

    # Re-layout the tiny weights outside the kernel (cheap, done once per call).
    w1t_all = w1.astype(jnp.float32).T          # (50, 2)
    w1x = w1t_all[:, 0:1]                       # (50, 1)
    w1t_ = w1t_all[:, 1:2]                      # (50, 1)
    b1c = b1.astype(jnp.float32).T              # (50, 1)
    w2T = w2.astype(jnp.float32).T              # (50, 50)
    b2c = b2.astype(jnp.float32).T              # (50, 1)
    w3c = w3.astype(jnp.float32)                # (50, 1)
    b3c = b3.astype(jnp.float32)                # (1, 1)

    rep = lambda shape: pl.BlockSpec(shape, lambda i: (0, 0))  # replicated block
    lane_spec = pl.BlockSpec((1, tn_eff), lambda i: (0, i))    # batch-tiled row

    out_row = pl.pallas_call(
        _pinn_kernel,
        out_shape=jax.ShapeDtypeStruct((1, n_pad), jnp.float32),
        grid_spec=pltpu.PrefetchScalarGridSpec(
            num_scalar_prefetch=0,
            grid=grid,
            in_specs=[
                lane_spec,                      # x tile
                lane_spec,                      # t tile
                rep((HIDDEN, 1)),               # w1 (x column)
                rep((HIDDEN, 1)),               # w1 (t column)
                rep((HIDDEN, 1)),               # b1
                rep((HIDDEN, HIDDEN)),          # w2^T
                rep((HIDDEN, 1)),               # b2
                rep((HIDDEN, 1)),               # w3
                rep((1, 1)),                    # b3
            ],
            out_specs=lane_spec,
        ),
        compiler_params=pltpu.CompilerParams(
            dimension_semantics=("parallel",),
        ),
    )(x_row, t_row, w1x, w1t_, b1c, w2T, b2c, w3c, b3c)

    return out_row[0, :n].reshape(n, 1)


def init_params(key):
    """Deterministic init matching the torch module's parameter shapes.

    Weights are stored transposed relative to torch (in_features, out_features)
    so the math is xt @ W + b. Uses PyTorch-style U(-1/sqrt(fan_in), 1/sqrt(fan_in)).
    """
    dims = [(2, HIDDEN), (HIDDEN, HIDDEN), (HIDDEN, 1)]
    params = []
    for (fan_in, fan_out) in dims:
        key, kw, kb = jax.random.split(key, 3)
        bound = 1.0 / jnp.sqrt(jnp.float32(fan_in))
        w = jax.random.uniform(kw, (fan_in, fan_out), jnp.float32, -bound, bound)
        b = jax.random.uniform(kb, (1, fan_out), jnp.float32, -bound, bound)
        params += [w, b]
    return tuple(params)


def _reference_forward(x, t, params):
    w1, b1, w2, b2, w3, b3 = params
    xt = jnp.concatenate([x, t], axis=1)
    h = jnp.tanh(xt @ w1 + b1)
    h = jnp.tanh(h @ w2 + b2)
    return h @ w3 + b3


if __name__ == "__main__":
    key = jax.random.PRNGKey(0)
    kp, kx, kt = jax.random.split(key, 3)

    params = init_params(kp)

    N = 300  # batch of (x, t) collocation points (exercises padding + multi-step grid)
    x = jax.random.uniform(kx, (N, 1), jnp.float32, -1.0, 1.0)
    t = jax.random.uniform(kt, (N, 1), jnp.float32, 0.0, 1.0)

    out = pinn_1d_burgers_forward(x, t, params, tn=128)
    out = jax.block_until_ready(out)

    ref = _reference_forward(x, t, params)
    assert out.shape == (N, 1), out.shape
    assert jnp.allclose(out, ref, atol=1e-5, rtol=1e-5), float(
        jnp.max(jnp.abs(out - ref))
    )

    # Also check the default (large-tile) path once.
    out2 = jax.block_until_ready(pinn_1d_burgers_forward(x, t, params))
    assert jnp.allclose(out2, ref, atol=1e-5, rtol=1e-5)

    print("KERNEL_OK")
</pallas_src>

<mosaic_0001>
module attributes {stable_mosaic.version = 11 : i64} {
  func.func @_pinn_kernel(%arg0: i32, %arg1: memref<1x128xf32, #tpu.memory_space<vmem>>, %arg2: memref<1x128xf32, #tpu.memory_space<vmem>>, %arg3: memref<50x1xf32, #tpu.memory_space<vmem>>, %arg4: memref<50x1xf32, #tpu.memory_space<vmem>>, %arg5: memref<50x1xf32, #tpu.memory_space<vmem>>, %arg6: memref<50x50xf32, #tpu.memory_space<vmem>>, %arg7: memref<50x1xf32, #tpu.memory_space<vmem>>, %arg8: memref<50x1xf32, #tpu.memory_space<vmem>>, %arg9: memref<1x1xf32, #tpu.memory_space<vmem>>, %arg10: memref<1x128xf32, #tpu.memory_space<vmem>>) attributes {dimension_semantics = [#tpu.dimension_semantics<parallel>], iteration_bounds = array<i64: 3>, scalar_prefetch = 0 : i64, scratch_operands = 0 : i64, tpu.core_type = #tpu.core_type<tc>, window_params = [{transform_indices = @transform_0, window_bounds = array<i64: 1, 128>}, {transform_indices = @transform_1, window_bounds = array<i64: 1, 128>}, {pipeline_mode = #tpu.pipeline_mode<synchronous>, transform_indices = @transform_2, window_bounds = array<i64: 50, 1>}, {pipeline_mode = #tpu.pipeline_mode<synchronous>, transform_indices = @transform_3, window_bounds = array<i64: 50, 1>}, {pipeline_mode = #tpu.pipeline_mode<synchronous>, transform_indices = @transform_4, window_bounds = array<i64: 50, 1>}, {pipeline_mode = #tpu.pipeline_mode<synchronous>, transform_indices = @transform_5, window_bounds = array<i64: 50, 50>}, {pipeline_mode = #tpu.pipeline_mode<synchronous>, transform_indices = @transform_6, window_bounds = array<i64: 50, 1>}, {pipeline_mode = #tpu.pipeline_mode<synchronous>, transform_indices = @transform_7, window_bounds = array<i64: 50, 1>}, {pipeline_mode = #tpu.pipeline_mode<synchronous>, transform_indices = @transform_8, window_bounds = array<i64: 1, 1>}, {transform_indices = @transform_9, window_bounds = array<i64: 1, 128>}]} {
    %c0 = arith.constant 0 : index
    %c0_0 = arith.constant 0 : index
    %0 = vector.load %arg1[%c0, %c0_0] : memref<1x128xf32, #tpu.memory_space<vmem>>, vector<1x128xf32>
    %c0_1 = arith.constant 0 : index
    %c0_2 = arith.constant 0 : index
    %1 = vector.load %arg2[%c0_1, %c0_2] : memref<1x128xf32, #tpu.memory_space<vmem>>, vector<1x128xf32>
    %c0_3 = arith.constant 0 : index
    %c0_4 = arith.constant 0 : index
    %2 = vector.load %arg3[%c0_3, %c0_4] : memref<50x1xf32, #tpu.memory_space<vmem>>, vector<50x1xf32>
    %3 = vector.broadcast %2 : vector<50x1xf32> to vector<50x128xf32>
    %4 = vector.broadcast %0 : vector<1x128xf32> to vector<50x128xf32>
    %5 = arith.mulf %3, %4 : vector<50x128xf32>
    %c0_5 = arith.constant 0 : index
    %c0_6 = arith.constant 0 : index
    %6 = vector.load %arg4[%c0_5, %c0_6] : memref<50x1xf32, #tpu.memory_space<vmem>>, vector<50x1xf32>
    %7 = vector.broadcast %6 : vector<50x1xf32> to vector<50x128xf32>
    %8 = vector.broadcast %1 : vector<1x128xf32> to vector<50x128xf32>
    %9 = arith.mulf %7, %8 : vector<50x128xf32>
    %10 = arith.addf %5, %9 : vector<50x128xf32>
    %c0_7 = arith.constant 0 : index
    %c0_8 = arith.constant 0 : index
    %11 = vector.load %arg5[%c0_7, %c0_8] : memref<50x1xf32, #tpu.memory_space<vmem>>, vector<50x1xf32>
    %12 = vector.broadcast %11 : vector<50x1xf32> to vector<50x128xf32>
    %13 = arith.addf %10, %12 : vector<50x128xf32>
    %14 = math.tanh %13 : vector<50x128xf32>
    %c0_9 = arith.constant 0 : index
    %c0_10 = arith.constant 0 : index
    %15 = vector.load %arg6[%c0_9, %c0_10] : memref<50x50xf32, #tpu.memory_space<vmem>>, vector<50x50xf32>
    %cst = arith.constant dense<0.000000e+00> : vector<50x128xf32>
    %16 = tpu.matmul %15, %14, %cst {dimension_numbers = #tpu.dot_dimension_numbers<[1], [0], [0], [1], [0, 0, 1, 1], [], []>} : vector<50x50xf32>, vector<50x128xf32>, vector<50x128xf32> -> vector<50x128xf32>
    %c0_11 = arith.constant 0 : index
    %c0_12 = arith.constant 0 : index
    %17 = vector.load %arg7[%c0_11, %c0_12] : memref<50x1xf32, #tpu.memory_space<vmem>>, vector<50x1xf32>
    %18 = vector.broadcast %17 : vector<50x1xf32> to vector<50x128xf32>
    %19 = arith.addf %16, %18 : vector<50x128xf32>
    %20 = math.tanh %19 : vector<50x128xf32>
    %c0_13 = arith.constant 0 : index
    %c0_14 = arith.constant 0 : index
    %21 = vector.load %arg8[%c0_13, %c0_14] : memref<50x1xf32, #tpu.memory_space<vmem>>, vector<50x1xf32>
    %22 = vector.broadcast %21 : vector<50x1xf32> to vector<50x128xf32>
    %23 = arith.mulf %22, %20 : vector<50x128xf32>
    %cst_15 = arith.constant dense<0.000000e+00> : vector<128xf32>
    %24 = vector.multi_reduction <add>, %23, %cst_15 [0] : vector<50x128xf32> to vector<128xf32>
    %25 = vector.shape_cast %24 : vector<128xf32> to vector<1x128xf32>
    %c0_16 = arith.constant 0 : index
    %c0_17 = arith.constant 0 : index
    %26 = vector.load %arg9[%c0_16, %c0_17] : memref<1x1xf32, #tpu.memory_space<vmem>>, vector<1x1xf32>
    %27 = vector.broadcast %26 : vector<1x1xf32> to vector<1x128xf32>
    %28 = arith.addf %25, %27 : vector<1x128xf32>
    %c0_18 = arith.constant 0 : index
    %c0_19 = arith.constant 0 : index
    %29 = vector.load %arg10[%c0_18, %c0_19] : memref<1x128xf32, #tpu.memory_space<vmem>>, vector<1x128xf32>
    tpu.vector_store %arg10[%c0_18, %c0_19], %28 {strides = array<i32>} : memref<1x128xf32, #tpu.memory_space<vmem>>, vector<1x128xf32>,
    return
  }
  func.func @transform_0(%arg0: i32) -> (i32, i32) {
    %c0_i32 = arith.constant 0 : i32
    %c0_i32_0 = arith.constant 0 : i32
    return %c0_i32, %arg0 : i32, i32
  }
  func.func @transform_1(%arg0: i32) -> (i32, i32) {
    %c0_i32 = arith.constant 0 : i32
    %c0_i32_0 = arith.constant 0 : i32
    return %c0_i32, %arg0 : i32, i32
  }
  func.func @transform_2(%arg0: i32) -> (i32, i32) {
    %c0_i32 = arith.constant 0 : i32
    %c0_i32_0 = arith.constant 0 : i32
    %c0_i32_1 = arith.constant 0 : i32
    return %c0_i32, %c0_i32_0 : i32, i32
  }
  func.func @transform_3(%arg0: i32) -> (i32, i32) {
    %c0_i32 = arith.constant 0 : i32
    %c0_i32_0 = arith.constant 0 : i32
    %c0_i32_1 = arith.constant 0 : i32
    return %c0_i32, %c0_i32_0 : i32, i32
  }
  func.func @transform_4(%arg0: i32) -> (i32, i32) {
    %c0_i32 = arith.constant 0 : i32
    %c0_i32_0 = arith.constant 0 : i32
    %c0_i32_1 = arith.constant 0 : i32
    return %c0_i32, %c0_i32_0 : i32, i32
  }
  func.func @transform_5(%arg0: i32) -> (i32, i32) {
    %c0_i32 = arith.constant 0 : i32
    %c0_i32_0 = arith.constant 0 : i32
    %c0_i32_1 = arith.constant 0 : i32
    return %c0_i32, %c0_i32_0 : i32, i32
  }
  func.func @transform_6(%arg0: i32) -> (i32, i32) {
    %c0_i32 = arith.constant 0 : i32
    %c0_i32_0 = arith.constant 0 : i32
    %c0_i32_1 = arith.constant 0 : i32
    return %c0_i32, %c0_i32_0 : i32, i32
  }
  func.func @transform_7(%arg0: i32) -> (i32, i32) {
    %c0_i32 = arith.constant 0 : i32
    %c0_i32_0 = arith.constant 0 : i32
    %c0_i32_1 = arith.constant 0 : i32
    return %c0_i32, %c0_i32_0 : i32, i32
  }
  func.func @transform_8(%arg0: i32) -> (i32, i32) {
    %c0_i32 = arith.constant 0 : i32
    %c0_i32_0 = arith.constant 0 : i32
    %c0_i32_1 = arith.constant 0 : i32
    return %c0_i32, %c0_i32_0 : i32, i32
  }
  func.func @transform_9(%arg0: i32) -> (i32, i32) {
    %c0_i32 = arith.constant 0 : i32
    %c0_i32_0 = arith.constant 0 : i32
    return %c0_i32, %arg0 : i32, i32
  }
}

</mosaic_0001>

<llo_original>
// kernel: pinn_1d_burgers_forward.1
$region0: #{pinn_1d_burgers_forward.1}
  #allocation0 [shape = 'u32[]', space=smem, size = 0x4, offset = 0x4, fixed_abs, tag = 'smem constant byte address 0x4 - core index']
  #allocation1 [shape = 'u32[144,128]{1,0:T(1,128)}', space=vmem, size = 0x12000, scoped, tag = 'internal scratch']
  #allocation2 [shape = 'f32[1,1]{1,0:T(1,128)S(1)}', space=vmem, size = 0x200, scoped, tag = 'scoped memory for pinn_1d_burgers_forward.1']
  %s0 = inlined_call_operand.vmem [shape: f32[1,384], index: 0, kind: input, shape index: {}]
  %s1 = inlined_call_operand.vmem [shape: f32[1,384], index: 1, kind: input, shape index: {}]
  %s2 = inlined_call_operand.vmem [shape: f32[50,1], index: 2, kind: input, shape index: {}]
  %s3 = inlined_call_operand.vmem [shape: f32[50,1], index: 3, kind: input, shape index: {}]
  %s4 = inlined_call_operand.vmem [shape: f32[50,1], index: 4, kind: input, shape index: {}]
  %s5 = inlined_call_operand.vmem [shape: f32[50,50], index: 5, kind: input, shape index: {}]
  %s6 = inlined_call_operand.vmem [shape: f32[50,1], index: 6, kind: input, shape index: {}]
  %s7 = inlined_call_operand.vmem [shape: f32[50,1], index: 7, kind: input, shape index: {}]
  %s8 = inlined_call_operand.<no memory space> [shape: f32[1,1], index: 8, kind: input, shape index: {}]
  %s9 = inlined_call_operand.vmem [shape: f32[1,384], index: 9, kind: output, shape index: {}]
  %s10 = sld [smem:[#allocation0]]
  $region69: #{pinn_1d_burgers_forward.1} parent=0
    _
  %s12 = ssub.s32 1, %s10
  %s13 = scalar_select 0, %s12, %s10
  %v14 = vstv %s8
  %15 = vst [vmem:[#allocation2] sm:$0x1] %v14
  loop: start=0, step=1, limit=5
  $region2: #{pinn_1d_burgers_forward.1} parent=0 // loop_pre_header
    _
  $region3: #{pinn_1d_burgers_forward.1} parent=0 // loop_header
    %s17 = sphi 0, %s21
    %p18 = scmp.ge.s32.totalorder %s17, 5
    %s27 = sphi 0, %s29
    %s30 = sphi 0, %s27
    %s31 = sphi 0, %s30
    %s47 = sphi 0, %s31
    %s53 = sphi 0, %s55
    %s56 = sphi 0, %s53
    %s57 = sphi 0, %s56
    %s73 = sphi 0, %s57
    %s77 = sphi 0, %s77
    %s79 = sphi 0, %s77
    %s80 = sphi 0, %s79
    %s94 = sphi 0, %s80
    %s98 = sphi 0, %s98
    %s100 = sphi 0, %s98
    %s101 = sphi 0, %s100
    %s115 = sphi 0, %s101
    %s119 = sphi 0, %s119
    %s121 = sphi 0, %s119
    %s122 = sphi 0, %s121
    %s136 = sphi 0, %s122
    %s140 = sphi 0, %s140
    %s142 = sphi 0, %s140
    %s143 = sphi 0, %s142
    %s157 = sphi 0, %s143
    %s161 = sphi 0, %s161
    %s163 = sphi 0, %s161
    %s164 = sphi 0, %s163
    %s178 = sphi 0, %s164
    %s182 = sphi 0, %s182
    %s184 = sphi 0, %s182
    %s185 = sphi 0, %s184
    %s199 = sphi 0, %s185
    %s203 = sphi 0, %s203
    %s205 = sphi 0, %s203
    %s206 = sphi 0, %s205
    %s220 = sphi 0, %s206
    %s226 = sphi 0, %s228
    %s229 = sphi 0, %s226
    %s230 = sphi 0, %s229
    %s246 = sphi 0, %s230
  $region4: #{pinn_1d_burgers_forward.1} parent=0 // loop_header_branch
    %20 = sbr.rel (%p18) target = $region8
  $region5: #{pinn_1d_burgers_forward.1} parent=0 // loop_body
    %s22 = ssub.s32 %s17, 1
    %s23 = ssub.s32 %s17, 2
    %s24 = sadd.s32 %s17, 1
    %s25 = ssub.s32 %s17, %s24
    %p26 = scmp.eq.s32.totalorder %s25, 0
    %s28 = sadd.s32 %s27, 1
    %s29 = scalar_select %p26, %s27, %s28
    %p32 = pneg %p26
    %p33 = scmp.eq.s32.totalorder %s17, 2
    %p34 = por %p32, %p33
    %p35 = scmp.ne.s32.totalorder %s27, %s30
    %p36 = scmp.eq.s32.totalorder %s17, 0
    %p37 = por %p35, %p36
    %p38 = scmp.ne.s32.totalorder %s27, %s30
    %p39 = scmp.eq.s32.totalorder %s22, 2
    %p40 = por %p38, %p39
    %p41 = scmp.ne.s32.totalorder %s30, %s31
    %p42 = scmp.eq.s32.totalorder %s22, 0
    %p43 = por %p41, %p42
    %p44 = scmp.ne.s32.totalorder %s30, %s31
    %p45 = scmp.eq.s32.totalorder %s23, 2
    %p46 = por %p44, %p45
    %p48 = scmp.ne.s32.totalorder %s31, %s47
    %p49 = scmp.eq.s32.totalorder %s23, 0
    %p50 = por %p48, %p49
    %s51 = ssub.s32 %s17, %s24
    %p52 = scmp.eq.s32.totalorder %s51, 0
    %s54 = sadd.s32 %s53, 1
    %s55 = scalar_select %p52, %s53, %s54
    %p58 = pneg %p52
    %p59 = scmp.eq.s32.totalorder %s17, 2
    %p60 = por %p58, %p59
    %p61 = scmp.ne.s32.totalorder %s53, %s56
    %p62 = scmp.eq.s32.totalorder %s17, 0
    %p63 = por %p61, %p62
    %p64 = scmp.ne.s32.totalorder %s53, %s56
    %p65 = scmp.eq.s32.totalorder %s22, 2
    %p66 = por %p64, %p65
    %p67 = scmp.ne.s32.totalorder %s56, %s57
    %p68 = scmp.eq.s32.totalorder %s22, 0
    %p69 = por %p67, %p68
    %p70 = scmp.ne.s32.totalorder %s56, %s57
    %p71 = scmp.eq.s32.totalorder %s23, 2
    %p72 = por %p70, %p71
    %p74 = scmp.ne.s32.totalorder %s57, %s73
    %p75 = scmp.eq.s32.totalorder %s23, 0
    %p76 = por %p74, %p75
    %s78 = sadd.s32 %s77, 1
    %p81 = scmp.eq.s32.totalorder %s17, 2
    %p82 = scmp.ne.s32.totalorder %s77, %s79
    %p83 = scmp.eq.s32.totalorder %s17, 0
    %p84 = por %p82, %p83
    %p85 = scmp.ne.s32.totalorder %s77, %s79
    %p86 = scmp.eq.s32.totalorder %s22, 2
    %p87 = por %p85, %p86
    %p88 = scmp.ne.s32.totalorder %s79, %s80
    %p89 = scmp.eq.s32.totalorder %s22, 0
    %p90 = por %p88, %p89
    %p91 = scmp.ne.s32.totalorder %s79, %s80
    %p92 = scmp.eq.s32.totalorder %s23, 2
    %p93 = por %p91, %p92
    %p95 = scmp.ne.s32.totalorder %s80, %s94
    %p96 = scmp.eq.s32.totalorder %s23, 0
    %p97 = por %p95, %p96
    %s99 = sadd.s32 %s98, 1
    %p102 = scmp.eq.s32.totalorder %s17, 2
    %p103 = scmp.ne.s32.totalorder %s98, %s100
    %p104 = scmp.eq.s32.totalorder %s17, 0
    %p105 = por %p103, %p104
    %p106 = scmp.ne.s32.totalorder %s98, %s100
    %p107 = scmp.eq.s32.totalorder %s22, 2
    %p108 = por %p106, %p107
    %p109 = scmp.ne.s32.totalorder %s100, %s101
    %p110 = scmp.eq.s32.totalorder %s22, 0
    %p111 = por %p109, %p110
    %p112 = scmp.ne.s32.totalorder %s100, %s101
    %p113 = scmp.eq.s32.totalorder %s23, 2
    %p114 = por %p112, %p113
    %p116 = scmp.ne.s32.totalorder %s101, %s115
    %p117 = scmp.eq.s32.totalorder %s23, 0
    %p118 = por %p116, %p117
    %s120 = sadd.s32 %s119, 1
    %p123 = scmp.eq.s32.totalorder %s17, 2
    %p124 = scmp.ne.s32.totalorder %s119, %s121
    %p125 = scmp.eq.s32.totalorder %s17, 0
    %p126 = por %p124, %p125
    %p127 = scmp.ne.s32.totalorder %s119, %s121
    %p128 = scmp.eq.s32.totalorder %s22, 2
    %p129 = por %p127, %p128
    %p130 = scmp.ne.s32.totalorder %s121, %s122
    %p131 = scmp.eq.s32.totalorder %s22, 0
    %p132 = por %p130, %p131
    %p133 = scmp.ne.s32.totalorder %s121, %s122
    %p134 = scmp.eq.s32.totalorder %s23, 2
    %p135 = por %p133, %p134
    %p137 = scmp.ne.s32.totalorder %s122, %s136
    %p138 = scmp.eq.s32.totalorder %s23, 0
    %p139 = por %p137, %p138
    %s141 = sadd.s32 %s140, 1
    %p144 = scmp.eq.s32.totalorder %s17, 2
    %p145 = scmp.ne.s32.totalorder %s140, %s142
    %p146 = scmp.eq.s32.totalorder %s17, 0
    %p147 = por %p145, %p146
    %p148 = scmp.ne.s32.totalorder %s140, %s142
    %p149 = scmp.eq.s32.totalorder %s22, 2
    %p150 = por %p148, %p149
    %p151 = scmp.ne.s32.totalorder %s142, %s143
    %p152 = scmp.eq.s32.totalorder %s22, 0
    %p153 = por %p151, %p152
    %p154 = scmp.ne.s32.totalorder %s142, %s143
    %p155 = scmp.eq.s32.totalorder %s23, 2
    %p156 = por %p154, %p155
    %p158 = scmp.ne.s32.totalorder %s143, %s157
    %p159 = scmp.eq.s32.totalorder %s23, 0
    %p160 = por %p158, %p159
    %s162 = sadd.s32 %s161, 1
    %p165 = scmp.eq.s32.totalorder %s17, 2
    %p166 = scmp.ne.s32.totalorder %s161, %s163
    %p167 = scmp.eq.s32.totalorder %s17, 0
    %p168 = por %p166, %p167
    %p169 = scmp.ne.s32.totalorder %s161, %s163
    %p170 = scmp.eq.s32.totalorder %s22, 2
    %p171 = por %p169, %p170
    %p172 = scmp.ne.s32.totalorder %s163, %s164
    %p173 = scmp.eq.s32.totalorder %s22, 0
    %p174 = por %p172, %p173
    %p175 = scmp.ne.s32.totalorder %s163, %s164
    %p176 = scmp.eq.s32.totalorder %s23, 2
    %p177 = por %p175, %p176
    %p179 = scmp.ne.s32.totalorder %s164, %s178
    %p180 = scmp.eq.s32.totalorder %s23, 0
    %p181 = por %p179, %p180
    %s183 = sadd.s32 %s182, 1
    %p186 = scmp.eq.s32.totalorder %s17, 2
    %p187 = scmp.ne.s32.totalorder %s182, %s184
    %p188 = scmp.eq.s32.totalorder %s17, 0
    %p189 = por %p187, %p188
    %p190 = scmp.ne.s32.totalorder %s182, %s184
    %p191 = scmp.eq.s32.totalorder %s22, 2
    %p192 = por %p190, %p191
    %p193 = scmp.ne.s32.totalorder %s184, %s185
    %p194 = scmp.eq.s32.totalorder %s22, 0
    %p195 = por %p193, %p194
    %p196 = scmp.ne.s32.totalorder %s184, %s185
    %p197 = scmp.eq.s32.totalorder %s23, 2
    %p198 = por %p196, %p197
    %p200 = scmp.ne.s32.totalorder %s185, %s199
    %p201 = scmp.eq.s32.totalorder %s23, 0
    %p202 = por %p200, %p201
    %s204 = sadd.s32 %s203, 1
    %p207 = scmp.eq.s32.totalorder %s17, 2
    %p208 = scmp.ne.s32.totalorder %s203, %s205
    %p209 = scmp.eq.s32.totalorder %s17, 0
    %p210 = por %p208, %p209
    %p211 = scmp.ne.s32.totalorder %s203, %s205
    %p212 = scmp.eq.s32.totalorder %s22, 2
    %p213 = por %p211, %p212
    %p214 = scmp.ne.s32.totalorder %s205, %s206
    %p215 = scmp.eq.s32.totalorder %s22, 0
    %p216 = por %p214, %p215
    %p217 = scmp.ne.s32.totalorder %s205, %s206
    %p218 = scmp.eq.s32.totalorder %s23, 2
    %p219 = por %p217, %p218
    %p221 = scmp.ne.s32.totalorder %s206, %s220
    %p222 = scmp.eq.s32.totalorder %s23, 0
    %p223 = por %p221, %p222
    %s224 = ssub.s32 %s17, %s24
    %p225 = scmp.eq.s32.totalorder %s224, 0
    %s227 = sadd.s32 %s226, 1
    %s228 = scalar_select %p225, %s226, %s227
    %p231 = pneg %p225
    %p232 = scmp.eq.s32.totalorder %s17, 2
    %p233 = por %p231, %p232
    %p234 = scmp.ne.s32.totalorder %s226, %s229
    %p235 = scmp.eq.s32.totalorder %s17, 0
    %p236 = por %p234, %p235
    %p237 = scmp.ne.s32.totalorder %s226, %s229
    %p238 = scmp.eq.s32.totalorder %s22, 2
    %p239 = por %p237, %p238
    %p240 = scmp.ne.s32.totalorder %s229, %s230
    %p241 = scmp.eq.s32.totalorder %s22, 0
    %p242 = por %p240, %p241
    %p243 = scmp.ne.s32.totalorder %s229, %s230
    %p244 = scmp.eq.s32.totalorder %s23, 2
    %p245 = por %p243, %p244
    %p247 = scmp.ne.s32.totalorder %s230, %s246
    %p248 = scmp.eq.s32.totalorder %s23, 0
    %p249 = por %p247, %p248
    %p250 = scmp.le.s32.totalorder 1, %s17
    %p251 = scmp.lt.s32.totalorder %s17, 4
    %p252 = pnand %p250, %p251
    %p253 = pneg %p252
    // Predicated region
    $region9: #{pinn_1d_burgers_forward.1} parent=5 // pred_check
      _
    $region10: #{pinn_1d_burgers_forward.1} parent=5 // pred_check_branch
      %255 = sbr.rel (%p252) target = $region12
    $region11: #{pinn_1d_burgers_forward.1} parent=5 // pred_region
      %s256 = ssub.s32 %s17, 1
      // Predicated region
      $region13: #{pinn_1d_burgers_forward.1} parent=11 // pred_check
        %p257 = pneg %p90
      $region14: #{pinn_1d_burgers_forward.1} parent=11 // pred_check_branch
        %259 = sbr.rel (%p257) target = $region16
      $region15: #{pinn_1d_burgers_forward.1} parent=11 // pred_region
        _
      $region16: #{pinn_1d_burgers_forward.1} parent=11 // pred_fallthru
        _
      // Predicated region
      $region17: #{pinn_1d_burgers_forward.1} parent=11 // pred_check
        %p260 = pneg %p111
      $region18: #{pinn_1d_burgers_forward.1} parent=11 // pred_check_branch
        %262 = sbr.rel (%p260) target = $region20
      $region19: #{pinn_1d_burgers_forward.1} parent=11 // pred_region
        _
      $region20: #{pinn_1d_burgers_forward.1} parent=11 // pred_fallthru
        _
      // Predicated region
      $region21: #{pinn_1d_burgers_forward.1} parent=11 // pred_check
        %p263 = pneg %p132
      $region22: #{pinn_1d_burgers_forward.1} parent=11 // pred_check_branch
        %265 = sbr.rel (%p263) target = $region24
      $region23: #{pinn_1d_burgers_forward.1} parent=11 // pred_region
        _
      $region24: #{pinn_1d_burgers_forward.1} parent=11 // pred_fallthru
        _
      // Predicated region
      $region25: #{pinn_1d_burgers_forward.1} parent=11 // pred_check
        %p266 = pneg %p153
      $region26: #{pinn_1d_burgers_forward.1} parent=11 // pred_check_branch
        %268 = sbr.rel (%p266) target = $region28
      $region27: #{pinn_1d_burgers_forward.1} parent=11 // pred_region
        _
      $region28: #{pinn_1d_burgers_forward.1} parent=11 // pred_fallthru
        _
      // Predicated region
      $region29: #{pinn_1d_burgers_forward.1} parent=11 // pred_check
        %p269 = pneg %p174
      $region30: #{pinn_1d_burgers_forward.1} parent=11 // pred_check_branch
        %271 = sbr.rel (%p269) target = $region32
      $region31: #{pinn_1d_burgers_forward.1} parent=11 // pred_region
        _
      $region32: #{pinn_1d_burgers_forward.1} parent=11 // pred_fallthru
        _
      // Predicated region
      $region33: #{pinn_1d_burgers_forward.1} parent=11 // pred_check
        %p272 = pneg %p195
      $region34: #{pinn_1d_burgers_forward.1} parent=11 // pred_check_branch
        %274 = sbr.rel (%p272) target = $region36
      $region35: #{pinn_1d_burgers_forward.1} parent=11 // pred_region
        _
      $region36: #{pinn_1d_burgers_forward.1} parent=11 // pred_fallthru
        _
      // Predicated region
      $region37: #{pinn_1d_burgers_forward.1} parent=11 // pred_check
        %p275 = pneg %p216
      $region38: #{pinn_1d_burgers_forward.1} parent=11 // pred_check_branch
        %277 = sbr.rel (%p275) target = $region40
      $region39: #{pinn_1d_burgers_forward.1} parent=11 // pred_region
        _
      $region40: #{pinn_1d_burgers_forward.1} parent=11 // pred_fallthru
        _
    $region12: #{pinn_1d_burgers_forward.1} parent=5 // pred_fallthru
      _
    %p278 = scmp.lt.s32.totalorder %s17, 3
    // Predicated region
    $region41: #{pinn_1d_burgers_forward.1} parent=5 // pred_check
      %p279 = pneg %p278
    $region42: #{pinn_1d_burgers_forward.1} parent=5 // pred_check_branch
      %281 = sbr.rel (%p279) target = $region44
    $region43: #{pinn_1d_burgers_forward.1} parent=5 // pred_region
      // Predicated region
      $region45: #{pinn_1d_burgers_forward.1} parent=43 // pred_check
        %p282 = pneg %p37
      $region46: #{pinn_1d_burgers_forward.1} parent=43 // pred_check_branch
        %284 = sbr.rel (%p282) target = $region48
      $region47: #{pinn_1d_burgers_forward.1} parent=43 // pred_region
        %p285 = scmp.lt.s32.totalorder %s17, 2
        %s286 = scalar_select %p285, %s17, 2
        %s287 = scalar_lea.vmem %s0, %s286
      $region48: #{pinn_1d_burgers_forward.1} parent=43 // pred_fallthru
        _
      // Predicated region
      $region49: #{pinn_1d_burgers_forward.1} parent=43 // pred_check
        %p288 = pneg %p63
      $region50: #{pinn_1d_burgers_forward.1} parent=43 // pred_check_branch
        %290 = sbr.rel (%p288) target = $region52
      $region51: #{pinn_1d_burgers_forward.1} parent=43 // pred_region
        %p291 = scmp.lt.s32.totalorder %s17, 2
        %s292 = scalar_select %p291, %s17, 2
        %s293 = scalar_lea.vmem %s1, %s292
      $region52: #{pinn_1d_burgers_forward.1} parent=43 // pred_fallthru
        _
    $region44: #{pinn_1d_burgers_forward.1} parent=5 // pred_fallthru
      _
    %p294 = scmp.le.s32.totalorder 1, %s17
    %p295 = scmp.lt.s32.totalorder %s17, 4
    %p296 = pnand %p294, %p295
    %p297 = pneg %p296
    // Predicated region
    $region53: #{pinn_1d_burgers_forward.1} parent=5 // pred_check
      _
    $region54: #{pinn_1d_burgers_forward.1} parent=5 // pred_check_branch
      %299 = sbr.rel (%p296) target = $region56
    $region55: #{pinn_1d_burgers_forward.1} parent=5 // pred_region
      %s300 = ssub.s32 %s17, 1
      %p301 = scmp.lt.s32.totalorder %s22, 2
      %s302 = scalar_select %p301, %s22, 2
      %s303 = scalar_lea.vmem %s0, %s302
      %p304 = pneg %p43
      %p305 = pneg %p40
      %p306 = scmp.lt.s32.totalorder %s22, 2
      %s307 = scalar_select %p306, %s22, 2
      %s308 = scalar_lea.vmem %s1, %s307
      %p309 = pneg %p69
      %p310 = pneg %p66
      %p311 = pneg %p90
      %p312 = pneg %p87
      %p313 = pneg %p111
      %p314 = pneg %p108
      %p315 = pneg %p132
      %p316 = pneg %p129
      %p317 = pneg %p153
      %p318 = pneg %p150
      %p319 = pneg %p174
      %p320 = pneg %p171
      %p321 = pneg %p195
      %p322 = pneg %p192
      %p323 = pneg %p216
      %p324 = pneg %p213
      %p325 = pneg %p242
      %p326 = pneg %p239
      %p327 = scmp.lt.s32.totalorder %s22, 2
      %s328 = scalar_select %p327, %s22, 2
      %s329 = scalar_lea.vmem %s9, %s328
      %p330 = scmp.lt.s32.totalorder %s22, 2
      %s331 = scalar_select %p330, %s22, 2
      %s332 = scalar_lea.vmem %s0, %s331
      %p333 = scmp.lt.s32.totalorder %s22, 2
      %s334 = scalar_select %p333, %s22, 2
      %s335 = scalar_lea.vmem %s1, %s334
      %p336 = scmp.lt.s32.totalorder %s22, 2
      %s337 = scalar_select %p336, %s22, 2
      %s338 = scalar_lea.vmem %s9, %s337
      %v339 = vld [vmem:[%s332] sm:$0x1]
      %v340 = vld [vmem:[%s335] sm:$0x1]
      %v341 = vld [vmem:[%s2] sm:$0xff]
      %v342 = vld [vmem:[%s2 + $0x8] sm:$0xff]
      %v343 = vld [vmem:[%s2 + $0x10] sm:$0xff]
      %v344 = vld [vmem:[%s2 + $0x18] sm:$0xff]
      %v345 = vld [vmem:[%s2 + $0x20] sm:$0xff]
      %v346 = vld [vmem:[%s2 + $0x28] sm:$0xff]
      %v347 = vld [vmem:[%s2 + $0x30] sm:$0x3]
      %349 = vset.pattern.permute.xlu0 0
      %350 = vperm.xlu0 %349, %v341
      %v351 = vpop.permute.xlu0 %350
      %354 = vset.pattern.permute.xlu0 0
      %355 = vperm.xlu0 %354, %v342
      %v356 = vpop.permute.xlu0 %355
      %359 = vset.pattern.permute.xlu0 0
      %360 = vperm.xlu0 %359, %v343
      %v361 = vpop.permute.xlu0 %360
      %364 = vset.pattern.permute.xlu0 0
      %365 = vperm.xlu0 %364, %v344
      %v366 = vpop.permute.xlu0 %365
      %369 = vset.pattern.permute.xlu0 0
      %370 = vperm.xlu0 %369, %v345
      %v371 = vpop.permute.xlu0 %370
      %374 = vset.pattern.permute.xlu0 0
      %375 = vperm.xlu0 %374, %v346
      %v376 = vpop.permute.xlu0 %375
      %379 = vset.pattern.permute.xlu0 0
      %380 = vperm.xlu0 %379, %v347
      %v381 = vpop.permute.xlu0 %380
      %v384 = vlaneseq
      %v385 = vshrl.u32 %v384, 7
      %v386 = vsub.s32 0, %v385
      %v387 = vrot.slane %v339, %v386
      %v389 = vmul.f32 %v351, %v387
      %v390 = vmul.f32 %v356, %v387
      %v391 = vmul.f32 %v361, %v387
      %v392 = vmul.f32 %v366, %v387
      %v393 = vmul.f32 %v371, %v387
      %v394 = vmul.f32 %v376, %v387
      %v395 = vmul.f32 %v381, %v387
      %v396 = vld [vmem:[%s3] sm:$0xff]
      %v397 = vld [vmem:[%s3 + $0x8] sm:$0xff]
      %v398 = vld [vmem:[%s3 + $0x10] sm:$0xff]
      %v399 = vld [vmem:[%s3 + $0x18] sm:$0xff]
      %v400 = vld [vmem:[%s3 + $0x20] sm:$0xff]
      %v401 = vld [vmem:[%s3 + $0x28] sm:$0xff]
      %v402 = vld [vmem:[%s3 + $0x30] sm:$0x3]
      %404 = vset.pattern.permute.xlu0 0
      %405 = vperm.xlu0 %404, %v396
      %v406 = vpop.permute.xlu0 %405
      %409 = vset.pattern.permute.xlu0 0
      %410 = vperm.xlu0 %409, %v397
      %v411 = vpop.permute.xlu0 %410
      %414 = vset.pattern.permute.xlu0 0
      %415 = vperm.xlu0 %414, %v398
      %v416 = vpop.permute.xlu0 %415
      %419 = vset.pattern.permute.xlu0 0
      %420 = vperm.xlu0 %419, %v399
      %v421 = vpop.permute.xlu0 %420
      %424 = vset.pattern.permute.xlu0 0
      %425 = vperm.xlu0 %424, %v400
      %v426 = vpop.permute.xlu0 %425
      %429 = vset.pattern.permute.xlu0 0
      %430 = vperm.xlu0 %429, %v401
      %v431 = vpop.permute.xlu0 %430
      %434 = vset.pattern.permute.xlu0 0
      %435 = vperm.xlu0 %434, %v402
      %v436 = vpop.permute.xlu0 %435
      %v439 = vlaneseq
      %v440 = vshrl.u32 %v439, 7
      %v441 = vsub.s32 0, %v440
      %v442 = vrot.slane %v340, %v441
      %v444 = vmul.f32 %v406, %v442
      %v445 = vmul.f32 %v411, %v442
      %v446 = vmul.f32 %v416, %v442
      %v447 = vmul.f32 %v421, %v442
      %v448 = vmul.f32 %v426, %v442
      %v449 = vmul.f32 %v431, %v442
      %v450 = vmul.f32 %v436, %v442
      %v451 = vadd.f32 %v389, %v444
      %v452 = vadd.f32 %v390, %v445
      %v453 = vadd.f32 %v391, %v446
      %v454 = vadd.f32 %v392, %v447
      %v455 = vadd.f32 %v393, %v448
      %v456 = vadd.f32 %v394, %v449
      %v457 = vadd.f32 %v395, %v450
      %v458 = vld [vmem:[%s4] sm:$0xff]
      %v459 = vld [vmem:[%s4 + $0x8] sm:$0xff]
      %v460 = vld [vmem:[%s4 + $0x10] sm:$0xff]
      %v461 = vld [vmem:[%s4 + $0x18] sm:$0xff]
      %v462 = vld [vmem:[%s4 + $0x20] sm:$0xff]
      %v463 = vld [vmem:[%s4 + $0x28] sm:$0xff]
      %v464 = vld [vmem:[%s4 + $0x30] sm:$0x3]
      %466 = vset.pattern.permute.xlu0 0
      %467 = vperm.xlu0 %466, %v458
      %v468 = vpop.permute.xlu0 %467
      %471 = vset.pattern.permute.xlu0 0
      %472 = vperm.xlu0 %471, %v459
      %v473 = vpop.permute.xlu0 %472
      %476 = vset.pattern.permute.xlu0 0
      %477 = vperm.xlu0 %476, %v460
      %v478 = vpop.permute.xlu0 %477
      %481 = vset.pattern.permute.xlu0 0
      %482 = vperm.xlu0 %481, %v461
      %v483 = vpop.permute.xlu0 %482
      %486 = vset.pattern.permute.xlu0 0
      %487 = vperm.xlu0 %486, %v462
      %v488 = vpop.permute.xlu0 %487
      %491 = vset.pattern.permute.xlu0 0
      %492 = vperm.xlu0 %491, %v463
      %v493 = vpop.permute.xlu0 %492
      %496 = vset.pattern.permute.xlu0 0
      %497 = vperm.xlu0 %496, %v464
      %v498 = vpop.permute.xlu0 %497
      %v500 = vadd.f32 %v451, %v468
      %v501 = vadd.f32 %v452, %v473
      %v502 = vadd.f32 %v453, %v478
      %v503 = vadd.f32 %v454, %v483
      %v504 = vadd.f32 %v455, %v488
      %v505 = vadd.f32 %v456, %v493
      %v506 = vadd.f32 %v457, %v498
      %v507 = vtanh.pop %v500
      %v508 = vtanh.pop %v501
      %v509 = vtanh.pop %v502
      %v510 = vtanh.pop %v503
      %v511 = vtanh.pop %v504
      %v512 = vtanh.pop %v505
      %v513 = vtanh.pop %v506
      %v514 = vld [vmem:[%s5] sm:$0xff]
      %v515 = vld [vmem:[%s5 + $0x8] sm:$0xff]
      %v516 = vld [vmem:[%s5 + $0x10] sm:$0xff]
      %v517 = vld [vmem:[%s5 + $0x18] sm:$0xff]
      %v518 = vld [vmem:[%s5 + $0x20] sm:$0xff]
      %v519 = vld [vmem:[%s5 + $0x28] sm:$0xff]
      %v520 = vld [vmem:[%s5 + $0x30] sm:$0x3]
      %v521 = vld [vmem:[%s6] sm:$0xff]
      %v522 = vld [vmem:[%s6 + $0x8] sm:$0xff]
      %v523 = vld [vmem:[%s6 + $0x10] sm:$0xff]
      %v524 = vld [vmem:[%s6 + $0x18] sm:$0xff]
      %v525 = vld [vmem:[%s6 + $0x20] sm:$0xff]
      %v526 = vld [vmem:[%s6 + $0x28] sm:$0xff]
      %v527 = vld [vmem:[%s6 + $0x30] sm:$0x3]
      %529 = vset.pattern.permute.xlu0 0
      %530 = vperm.xlu0 %529, %v521
      %v531 = vpop.permute.xlu0 %530
      %534 = vset.pattern.permute.xlu0 0
      %535 = vperm.xlu0 %534, %v522
      %v536 = vpop.permute.xlu0 %535
      %539 = vset.pattern.permute.xlu0 0
      %540 = vperm.xlu0 %539, %v523
      %v541 = vpop.permute.xlu0 %540
      %544 = vset.pattern.permute.xlu0 0
      %545 = vperm.xlu0 %544, %v524
      %v546 = vpop.permute.xlu0 %545
      %549 = vset.pattern.permute.xlu0 0
      %550 = vperm.xlu0 %549, %v525
      %v551 = vpop.permute.xlu0 %550
      %554 = vset.pattern.permute.xlu0 0
      %555 = vperm.xlu0 %554, %v526
      %v556 = vpop.permute.xlu0 %555
      %559 = vset.pattern.permute.xlu0 0
      %560 = vperm.xlu0 %559, %v527
      %v561 = vpop.permute.xlu0 %560
      %vm563 = vcmask 408576
      %v565 = vsel %vm563, %v514, 0
      %v568 = vsel %vm563, %v515, 0
      %v571 = vsel %vm563, %v516, 0
      %v574 = vsel %vm563, %v517, 0
      %v577 = vsel %vm563, %v518, 0
      %v580 = vsel %vm563, %v519, 0
      %v583 = vsel %vm563, %v520, 0
      %vm585 = vcmask 1041408
      %v587 = vsel %vm585, %v513, 0
      %589 = vmatprep.subr.mxu0 0.0
      %590 = vmatpush1.msra.mxu0 %v507
      %591 = vmatprep.subr.mxu0 0.0
      %592 = vmatpush1.msra.mxu0 %v508
      %593 = vmatprep.subr.mxu0 0.0
      %594 = vmatpush1.msra.mxu0 %v509
      %595 = vmatprep.subr.mxu0 0.0
      %596 = vmatpush1.msra.mxu0 %v510
      %597 = vmatprep.subr.mxu0 0.0
      %598 = vmatpush1.msra.mxu0 %v511
      %599 = vmatprep.subr.mxu0 0.0
      %600 = vmatpush1.msra.mxu0 %v512
      %601 = vmatprep.subr.mxu0 0.0
      %602 = vmatpush1.msra.mxu0 %v587
      %603 = vmatprep.subr.mxu0 0.0
      %604 = vmatpush1.msra.mxu0 0.0
      %605 = vmatprep.subr.mxu0 0.0
      %606 = vmatpush1.msra.mxu0 0.0
      %607 = vmatprep.subr.mxu0 0.0
      %608 = vmatpush1.msra.mxu0 0.0
      %609 = vmatprep.subr.mxu0 0.0
      %610 = vmatpush1.msra.mxu0 0.0
      %611 = vmatprep.subr.mxu0 0.0
      %612 = vmatpush1.msra.mxu0 0.0
      %613 = vmatprep.subr.mxu0 0.0
      %614 = vmatpush1.msra.mxu0 0.0
      %615 = vmatprep.subr.mxu0 0.0
      %616 = vmatpush1.msra.mxu0 0.0
      %617 = vmatprep.subr.mxu0 0.0
      %618 = vmatpush1.msra.mxu0 0.0
      %619 = vmatprep.subr.mxu0 0.0
      %620 = vmatpush1.msra.mxu0 0.0
      %621 = vmatprep.subr.mxu0 0.0
      %622 = vmatpush1.msra.mxu0 0.0
      %623 = vmatprep.subr.mxu0 0.0
      %624 = vmatpush1.msra.mxu0 0.0
      %625 = vmatprep.subr.mxu0 0.0
      %626 = vmatpush1.msra.mxu0 0.0
      %627 = vmatprep.subr.mxu0 0.0
      %628 = vmatpush1.msra.mxu0 0.0
      %629 = vmatprep.subr.mxu0 0.0
      %630 = vmatpush1.msra.mxu0 0.0
      %631 = vmatprep.subr.mxu0 0.0
      %632 = vmatpush1.msra.mxu0 0.0
      %633 = vmatprep.subr.mxu0 0.0
      %634 = vmatpush1.msra.mxu0 0.0
      %635 = vmatprep.subr.mxu0 0.0
      %636 = vmatpush1.msra.mxu0 0.0
      %637 = vmatprep.subr.mxu0 0.0
      %638 = vmatpush1.msra.mxu0 0.0
      %639 = vmatprep.subr.mxu0 0.0
      %640 = vmatpush1.msra.mxu0 0.0
      %641 = vmatprep.subr.mxu0 0.0
      %642 = vmatpush1.msra.mxu0 0.0
      %643 = vmatprep.subr.mxu0 0.0
      %644 = vmatpush1.msra.mxu0 0.0
      %645 = vmatprep.subr.mxu0 0.0
      %646 = vmatpush1.msra.mxu0 0.0
      %647 = vmatprep.subr.mxu0 0.0
      %648 = vmatpush1.msra.mxu0 0.0
      %649 = vmatprep.subr.mxu0 0.0
      %650 = vmatpush1.msra.mxu0 0.0
      %651 = vmatprep.subr.mxu0 0.0
      %652 = vmatpush1.msra.mxu0 0.0
      %653 = vmatprep.mubr.f32.mxu0 0.0
      %654 = vmatmul.mubr.f32.gmra.mrb[0].mxu0 %v565
      %v655 = vpop.f32.mrb[0].mxu0
      %v656 = vadd.f32 %v531, %v655
      %v657 = vpop.f32.mrb[0].mxu0
      %658 = vmatprep.mubr.f32.mxu0 0.0
      %659 = vmatmul.mubr.f32.gmra.mrb[0].mxu0 %v568
      %v660 = vpop.f32.mrb[0].mxu0
      %v661 = vadd.f32 %v536, %v660
      %v662 = vpop.f32.mrb[0].mxu0
      %663 = vmatprep.mubr.f32.mxu0 0.0
      %664 = vmatmul.mubr.f32.gmra.mrb[0].mxu0 %v571
      %v665 = vpop.f32.mrb[0].mxu0
      %v666 = vadd.f32 %v541, %v665
      %v667 = vpop.f32.mrb[0].mxu0
      %668 = vmatprep.mubr.f32.mxu0 0.0
      %669 = vmatmul.mubr.f32.gmra.mrb[0].mxu0 %v574
      %v670 = vpop.f32.mrb[0].mxu0
      %v671 = vadd.f32 %v546, %v670
      %v672 = vpop.f32.mrb[0].mxu0
      %673 = vmatprep.mubr.f32.mxu0 0.0
      %674 = vmatmul.mubr.f32.gmra.mrb[0].mxu0 %v577
      %v675 = vpop.f32.mrb[0].mxu0
      %v676 = vadd.f32 %v551, %v675
      %v677 = vpop.f32.mrb[0].mxu0
      %678 = vmatprep.mubr.f32.mxu0 0.0
      %679 = vmatmul.mubr.f32.gmra.mrb[0].mxu0 %v580
      %v680 = vpop.f32.mrb[0].mxu0
      %v681 = vadd.f32 %v556, %v680
      %v682 = vpop.f32.mrb[0].mxu0
      %683 = vmatprep.mubr.f32.mxu0 0.0
      %684 = vmatmul.mubr.f32.gmra.mrb[0].mxu0 %v583
      %v685 = vpop.f32.mrb[0].mxu0
      %v686 = vadd.f32 %v561, %v685
      %v687 = vpop.f32.mrb[0].mxu0
      %688 = vdwg.mxu0
      %v689 = vtanh.pop %v656
      %v690 = vtanh.pop %v661
      %v691 = vtanh.pop %v666
      %v692 = vtanh.pop %v671
      %v693 = vtanh.pop %v676
      %v694 = vtanh.pop %v681
      %v695 = vtanh.pop %v686
      %v696 = vld [vmem:[%s7] sm:$0xff]
      %v697 = vld [vmem:[%s7 + $0x8] sm:$0xff]
      %v698 = vld [vmem:[%s7 + $0x10] sm:$0xff]
      %v699 = vld [vmem:[%s7 + $0x18] sm:$0xff]
      %v700 = vld [vmem:[%s7 + $0x20] sm:$0xff]
      %v701 = vld [vmem:[%s7 + $0x28] sm:$0xff]
      %v702 = vld [vmem:[%s7 + $0x30] sm:$0x3]
      %704 = vset.pattern.permute.xlu0 0
      %705 = vperm.xlu0 %704, %v696
      %v706 = vpop.permute.xlu0 %705
      %709 = vset.pattern.permute.xlu0 0
      %710 = vperm.xlu0 %709, %v697
      %v711 = vpop.permute.xlu0 %710
      %714 = vset.pattern.permute.xlu0 0
      %715 = vperm.xlu0 %714, %v698
      %v716 = vpop.permute.xlu0 %715
      %719 = vset.pattern.permute.xlu0 0
      %720 = vperm.xlu0 %719, %v699
      %v721 = vpop.permute.xlu0 %720
      %724 = vset.pattern.permute.xlu0 0
      %725 = vperm.xlu0 %724, %v700
      %v726 = vpop.permute.xlu0 %725
      %729 = vset.pattern.permute.xlu0 0
      %730 = vperm.xlu0 %729, %v701
      %v731 = vpop.permute.xlu0 %730
      %734 = vset.pattern.permute.xlu0 0
      %735 = vperm.xlu0 %734, %v702
      %v736 = vpop.permute.xlu0 %735
      %v738 = vmul.f32 %v706, %v689
      %v739 = vmul.f32 %v711, %v690
      %v740 = vmul.f32 %v716, %v691
      %v741 = vmul.f32 %v721, %v692
      %v742 = vmul.f32 %v726, %v693
      %v743 = vmul.f32 %v731, %v694
      %v744 = vmul.f32 %v736, %v695
      %v745 = vadd.f32 %v738, %v739
      %v746 = vadd.f32 %v745, %v740
      %v747 = vadd.f32 %v746, %v741
      %v748 = vadd.f32 %v747, %v742
      %v749 = vadd.f32 %v748, %v743
      %v750 = vsel %vm585, %v744, 0.0
      %v751 = vadd.f32 %v749, %v750
      %v752 = vrot.slane %v751, 4
      %v753 = vadd.f32 %v751, %v752
      %v754 = vrot.slane %v753, 2
      %v755 = vadd.f32 %v753, %v754
      %v756 = vrot.slane %v755, 1
      %v757 = vadd.f32 %v755, %v756
      %v758 = vld [vmem:[#allocation2] sm:$0x1]
      %760 = vset.pattern.permute.xlu0 0
      %761 = vperm.xlu0 %760, %v758
      %v762 = vpop.permute.xlu0 %761
      %v764 = vlaneseq
      %v765 = vshrl.u32 %v764, 7
      %v766 = vsub.s32 0, %v765
      %v767 = vrot.slane %v762, %v766
      %v768 = vadd.f32 %v757, %v767
      %769 = vst [vmem:[%s338] sm:$0x1] %v768
      %p770 = scmp.lt.s32.totalorder %s22, 2
      %s771 = scalar_select %p770, %s22, 2
      %s772 = scalar_lea.vmem %s9, %s771
      // Predicated region
      $region57: #{pinn_1d_burgers_forward.1} parent=55 // pred_check
        %p773 = pneg %p239
      $region58: #{pinn_1d_burgers_forward.1} parent=55 // pred_check_branch
        %775 = sbr.rel (%p773) target = $region60
      $region59: #{pinn_1d_burgers_forward.1} parent=55 // pred_region
        _
      $region60: #{pinn_1d_burgers_forward.1} parent=55 // pred_fallthru
        _
    $region56: #{pinn_1d_burgers_forward.1} parent=5 // pred_fallthru
      _
    %p776 = scmp.le.s32.totalorder 2, %s17
    // Predicated region
    $region61: #{pinn_1d_burgers_forward.1} parent=5 // pred_check
      %p777 = pneg %p776
    $region62: #{pinn_1d_burgers_forward.1} parent=5 // pred_check_branch
      %779 = sbr.rel (%p777) target = $region64
    $region63: #{pinn_1d_burgers_forward.1} parent=5 // pred_region
      %s780 = ssub.s32 %s17, 2
      // Predicated region
      $region65: #{pinn_1d_burgers_forward.1} parent=63 // pred_check
        %p781 = pneg %p245
      $region66: #{pinn_1d_burgers_forward.1} parent=63 // pred_check_branch
        %783 = sbr.rel (%p781) target = $region68
      $region67: #{pinn_1d_burgers_forward.1} parent=63 // pred_region
        %p784 = scmp.lt.s32.totalorder %s23, 2
        %s785 = scalar_select %p784, %s23, 2
        %s786 = scalar_lea.vmem %s9, %s785
      $region68: #{pinn_1d_burgers_forward.1} parent=63 // pred_fallthru
        _
    $region64: #{pinn_1d_burgers_forward.1} parent=5 // pred_fallthru
      _
  $region6: #{pinn_1d_burgers_forward.1} parent=0 // loop_footer
    %s21 = sadd.s32 1, %s17
  $region7: #{pinn_1d_burgers_forward.1} parent=0 // loop_footer_branch
    %16 = sbr.rel target = $region3
  $region8: #{pinn_1d_burgers_forward.1} parent=0 // loop_exit
    _

</llo_original>
